<compile_context>
chip_gen: v7x
topology: tpu7x:2x2x1
jax: 0.10.0
libtpu: 0.0.40
codegen_flags: <defaults>
</compile_context>

<pallas_src>
import math

import jax
import jax.numpy as jnp
from jax.experimental import pallas as pl
from jax.experimental.pallas import tpu as pltpu


def _add_kernel(a_ref, b_ref, o_ref):
    # Pure VPU elementwise add on the whole VMEM tile.
    o_ref[...] = a_ref[...] + b_ref[...]


_LANE_CANDIDATES = (512, 256, 128)           # bounded, lane-dense last dim


def _sublane_mult(itemsize: int) -> int:
    # sublane packing granularity per dtype width
    return {4: 8, 2: 16, 1: 32}.get(itemsize, 8)


def _chip_config():
    """Return (vmem_limit_bytes, block_budget_bytes, num_tensorcores).

    Conservative defaults (32 MiB scoped, ~4 MiB blocks, 1 TC) if the
    hardware query is unavailable; larger budgets only on chips that report
    >=128 MiB physical VMEM (v5e/v6e)."""
    vmem_limit = 32 * 1024 * 1024
    block_budget = 4 * 1024 * 1024
    num_tcs = 1
    try:
        info = pltpu.get_tpu_info()
        cap = getattr(info, "vmem_capacity_bytes", None)
        if isinstance(cap, int) and cap >= 128 * 1024 * 1024:
            vmem_limit = 64 * 1024 * 1024
            block_budget = 8 * 1024 * 1024
        for attr in ("num_tensorcores", "num_cores", "core_count",
                     "tensorcores_per_chip"):
            val = getattr(info, attr, None)
            if isinstance(val, int) and val > 0:
                num_tcs = val
                break
    except Exception:
        pass
    return vmem_limit, block_budget, num_tcs


def _pallas_add(a, b, tile0, vmem_limit, total, itemsize):
    """Elementwise add of two identically shaped 2D/3D arrays, tiling only the
    leading dim (remaining dims at full extent)."""
    arr_shape = a.shape
    grid = (pl.cdiv(arr_shape[0], tile0),)
    block_shape = (tile0,) + tuple(arr_shape[1:])
    if len(arr_shape) == 2:
        index_map = lambda i: (i, 0)
    else:
        index_map = lambda i: (i, 0, 0)
    spec = pl.BlockSpec(block_shape, index_map)
    return pl.pallas_call(
        _add_kernel,
        out_shape=jax.ShapeDtypeStruct(arr_shape, a.dtype),
        grid_spec=pltpu.PrefetchScalarGridSpec(
            num_scalar_prefetch=0,
            grid=grid,
            in_specs=[spec, spec],
            out_specs=spec,
        ),
        compiler_params=pltpu.CompilerParams(
            dimension_semantics=("parallel",),
            vmem_limit_bytes=vmem_limit,
        ),
        cost_estimate=pl.CostEstimate(
            flops=total,
            transcendentals=0,
            bytes_accessed=3 * total * itemsize,
        ),
    )(a, b)


def asf_add(input1: jax.Array, input2: jax.Array) -> jax.Array:
    """Elementwise add of two equal-shape tensors via a Pallas TPU kernel."""
    assert input1.shape == input2.shape, "Add requires matching shapes"
    assert input1.dtype == input2.dtype, "Add requires matching dtypes"

    shape = input1.shape
    dtype = input1.dtype
    total = math.prod(shape) if shape else 1
    itemsize = jnp.dtype(dtype).itemsize
    sub_mult = _sublane_mult(itemsize)
    vmem_limit, block_budget, num_tcs = _chip_config()

    # ---- Path A: total divisible by 128 -> lane-dense flattened 2D slab ----
    lane = None
    for cand in _LANE_CANDIDATES:
        if total % cand == 0:
            lane = cand
            break
    if lane is not None:
        rows = total // lane
        a2 = input1.reshape(rows, lane)
        b2 = input2.reshape(rows, lane)
        if rows <= sub_mult:
            tile_rows = rows                       # single full-extent block
        else:
            budget_rows = max(sub_mult, block_budget // (lane * itemsize))
            tile_rows = min(rows, budget_rows)
            tile_rows = max(sub_mult, (tile_rows // sub_mult) * sub_mult)
            if num_tcs >= 2 and tile_rows >= rows and rows >= 2 * sub_mult:
                # Multi-TC chips only: guarantee >=2 balanced programs so both
                # TensorCores stream HBM.  Single-TC chips keep one block.
                half = -(-rows // 2)
                tile_rows = -(-half // sub_mult) * sub_mult
        out2 = _pallas_add(a2, b2, tile_rows, vmem_limit, total, itemsize)
        return out2.reshape(shape)

    # ---- Path B: non-128-divisible total (odd YOLO-head H*W etc.) ----------
    # Keep the last two dims at full extent (legal BlockSpec exception to the
    # (8,128) rule) and tile only a flattened leading dim.  No jnp.pad and no
    # output slice -> no extra HBM passes.
    if len(shape) >= 2:
        lead = math.prod(shape[:-2]) if len(shape) > 2 else 1
        d2, d3 = shape[-2], shape[-1]
    else:
        lead, d2, d3 = 1, 1, total
    # VMEM footprint of one leading-dim slice after (sublane, 128) padding.
    pad2 = -(-d2 // sub_mult) * sub_mult
    pad3 = -(-d3 // 128) * 128
    slice_bytes = max(1, pad2 * pad3 * itemsize)

    if slice_bytes <= block_budget:
        a3 = input1.reshape(lead, d2, d3)
        b3 = input2.reshape(lead, d2, d3)
        tile_lead = max(1, min(lead, block_budget // slice_bytes))
        if num_tcs >= 2 and tile_lead >= lead and lead >= 2:
            tile_lead = -(-lead // 2)              # balanced 2-way split (v7x)
        out3 = _pallas_add(a3, b3, tile_lead, vmem_limit, total, itemsize)
        return out3.reshape(shape)

    # ---- Fallback (rare): a single last-two-dims slice exceeds the budget ---
    # e.g. huge odd H*W with tiny leading dims; accept the pad + slice cost.
    lane = 128
    pad = (-total) % lane
    a1 = jnp.pad(input1.reshape(-1), (0, pad))
    b1 = jnp.pad(input2.reshape(-1), (0, pad))
    rows = (total + pad) // lane
    budget_rows = max(sub_mult, block_budget // (lane * itemsize))
    tile_rows = min(rows, max(sub_mult,
                              (min(rows, budget_rows) // sub_mult) * sub_mult))
    out1 = _pallas_add(a1.reshape(rows, lane), b1.reshape(rows, lane),
                       tile_rows, vmem_limit, total, itemsize)
    return out1.reshape(-1)[:total].reshape(shape)


if __name__ == "__main__":
    key = jax.random.PRNGKey(0)
    k1, k2 = jax.random.split(key)

    # Small NCHW shape consistent with the module (it is shape-agnostic).
    shape = (2, 4, 16, 16)
    x0 = jax.random.normal(k1, shape, dtype=jnp.float32)
    x1 = jax.random.normal(k2, shape, dtype=jnp.float32)

    out = jax.block_until_ready(asf_add(x0, x1))
    ref = x0 + x1
    assert out.shape == ref.shape
    assert jnp.allclose(out, ref, atol=1e-6), "mismatch vs reference"

    # Exercise the non-128-divisible path (YOLO-head style odd spatial dims).
    shape2 = (1, 3, 13, 13)
    y0 = jax.random.normal(k1, shape2, dtype=jnp.float32)
    y1 = jax.random.normal(k2, shape2, dtype=jnp.float32)
    out2 = jax.block_until_ready(asf_add(y0, y1))
    assert out2.shape == shape2
    assert jnp.allclose(out2, y0 + y1, atol=1e-6), "mismatch vs reference (odd path)"

    print("KERNEL_OK")
</pallas_src>

<mosaic_0001>
module attributes {stable_mosaic.version = 11 : i64} {
  func.func @_add_kernel(%arg0: i32, %arg1: memref<4x512xf32, #tpu.memory_space<vmem>>, %arg2: memref<4x512xf32, #tpu.memory_space<vmem>>, %arg3: memref<4x512xf32, #tpu.memory_space<vmem>>) attributes {dimension_semantics = [#tpu.dimension_semantics<parallel>], iteration_bounds = array<i64: 1>, scalar_prefetch = 0 : i64, scratch_operands = 0 : i64, tpu.core_type = #tpu.core_type<tc>, window_params = [{transform_indices = @transform_0, window_bounds = array<i64: 4, 512>}, {transform_indices = @transform_1, window_bounds = array<i64: 4, 512>}, {transform_indices = @transform_2, window_bounds = array<i64: 4, 512>}]} {
    %c0 = arith.constant 0 : index
    %c0_0 = arith.constant 0 : index
    %0 = vector.load %arg1[%c0, %c0_0] : memref<4x512xf32, #tpu.memory_space<vmem>>, vector<4x512xf32>
    %c0_1 = arith.constant 0 : index
    %c0_2 = arith.constant 0 : index
    %1 = vector.load %arg2[%c0_1, %c0_2] : memref<4x512xf32, #tpu.memory_space<vmem>>, vector<4x512xf32>
    %2 = arith.addf %0, %1 : vector<4x512xf32>
    %c0_3 = arith.constant 0 : index
    %c0_4 = arith.constant 0 : index
    %3 = vector.load %arg3[%c0_3, %c0_4] : memref<4x512xf32, #tpu.memory_space<vmem>>, vector<4x512xf32>
    tpu.vector_store %arg3[%c0_3, %c0_4], %2 {strides = array<i32>} : memref<4x512xf32, #tpu.memory_space<vmem>>, vector<4x512xf32>,
    return
  }
  func.func @transform_0(%arg0: i32) -> (i32, i32) {
    %c0_i32 = arith.constant 0 : i32
    %c0_i32_0 = arith.constant 0 : i32
    return %arg0, %c0_i32 : i32, i32
  }
  func.func @transform_1(%arg0: i32) -> (i32, i32) {
    %c0_i32 = arith.constant 0 : i32
    %c0_i32_0 = arith.constant 0 : i32
    return %arg0, %c0_i32 : i32, i32
  }
  func.func @transform_2(%arg0: i32) -> (i32, i32) {
    %c0_i32 = arith.constant 0 : i32
    %c0_i32_0 = arith.constant 0 : i32
    return %arg0, %c0_i32 : i32, i32
  }
}

</mosaic_0001>

<llo_original>
// kernel: tpu_custom_call.1
$region0: #{tpu_custom_call.1}
  #allocation0 [shape = 'u32[]', space=smem, size = 0x4, offset = 0x4, fixed_abs, tag = 'smem constant byte address 0x4 - core index']
  #allocation1 [shape = 'u32[144,128]{1,0:T(1,128)}', space=vmem, size = 0x12000, scoped, tag = 'internal scratch']
  %s0 = inlined_call_operand.hbm [shape: f32[4,512], index: 0, kind: input, shape index: {}]
  %s1 = inlined_call_operand.hbm [shape: f32[4,512], index: 1, kind: input, shape index: {}]
  %s2 = inlined_call_operand.hbm [shape: f32[4,512], index: 2, kind: output, shape index: {}]
  %s3 = sld [smem:[#allocation0]]
  $region26: #{tpu_custom_call.1} parent=0
    _
  %s5 = ssub.s32 1, %s3
  %s6 = scalar_select 0, %s5, %s3
  $region1: #{tpu_custom_call.1} parent=0
    #allocation2 [shape = 'u8[8192]{0}', space=vmem, size = 0x2000, scoped, tag = 'input window, operand 0, single buffered']
    #allocation3 [shape = 's32[1]{0}', space=sflag, size = 0x4, scoped, tag = 'scoped memory for tpu_custom_call.1']
    #allocation4 [shape = 's32[1]{0}', space=sflag, size = 0x4, scoped, tag = 'scoped memory for tpu_custom_call.1']
    #allocation5 [shape = 'u8[8192]{0}', space=vmem, size = 0x2000, scoped, tag = 'input window, operand 1, single buffered']
    #allocation6 [shape = 's32[1]{0}', space=sflag, size = 0x4, scoped, tag = 'scoped memory for tpu_custom_call.1']
    #allocation7 [shape = 'u8[8192]{0}', space=vmem, size = 0x2000, scoped, tag = 'output window, operand 0, single buffered']
    %7 = vsyncpa [#allocation3], 0
    %8 = vsyncpa [#allocation6], 0
    %9 = vsyncpa [#allocation4], 0
    // Predicated region
    $region2: #{tpu_custom_call.1} parent=1 // pred_check
      _
    $region3: #{tpu_custom_call.1} parent=1 // pred_check_branch
      %11 = sbr.rel (0) target = $region5
    $region4: #{tpu_custom_call.1} parent=1 // pred_region
      %s13 = ssub.s32 256, 256
      %14 = vsyncadd [#allocation3], %s13
      %s16 = sshll.u32 [#allocation2], 4
      %s17 = int_to_ptr.vmem [resolvable:$true] %s16
      %19 = dma.hbm_to_vmem [thread:$0]  %s0, 256, %s17, [#allocation3]
    $region5: #{tpu_custom_call.1} parent=1 // pred_fallthru
      _
    // Predicated region
    $region6: #{tpu_custom_call.1} parent=1 // pred_check
      _
    $region7: #{tpu_custom_call.1} parent=1 // pred_check_branch
      %21 = sbr.rel (0) target = $region9
    $region8: #{tpu_custom_call.1} parent=1 // pred_region
      %s23 = ssub.s32 256, 256
      %24 = vsyncadd [#allocation6], %s23
      %s26 = sshll.u32 [#allocation5], 4
      %s27 = int_to_ptr.vmem [resolvable:$true] %s26
      %29 = dma.hbm_to_vmem [thread:$0]  %s1, 256, %s27, [#allocation6]
    $region9: #{tpu_custom_call.1} parent=1 // pred_fallthru
      _
    // Predicated region
    $region10: #{tpu_custom_call.1} parent=1 // pred_check
      _
    $region11: #{tpu_custom_call.1} parent=1 // pred_check_branch
      %31 = sbr.rel (0) target = $region13
    $region12: #{tpu_custom_call.1} parent=1 // pred_region
      %32 = dma.done [#allocation3], 256
    $region13: #{tpu_custom_call.1} parent=1 // pred_fallthru
      _
    // Predicated region
    $region14: #{tpu_custom_call.1} parent=1 // pred_check
      _
    $region15: #{tpu_custom_call.1} parent=1 // pred_check_branch
      %34 = sbr.rel (0) target = $region17
    $region16: #{tpu_custom_call.1} parent=1 // pred_region
      %35 = dma.done [#allocation6], 256
    $region17: #{tpu_custom_call.1} parent=1 // pred_fallthru
      _
    %v36 = vld [vmem:[#allocation2] sm:$0xff]
    %v37 = vld [vmem:[#allocation2 + $0x8] sm:$0xff]
    %v38 = vld [vmem:[#allocation5] sm:$0xff]
    %v39 = vld [vmem:[#allocation5 + $0x8] sm:$0xff]
    %v40 = vadd.f32 %v36, %v38
    %v41 = vadd.f32 %v37, %v39
    %42 = vst [vmem:[#allocation7] sm:$0xff] %v40
    %43 = vst [vmem:[#allocation7 + $0x8] sm:$0xff] %v41
    // Predicated region
    $region18: #{tpu_custom_call.1} parent=1 // pred_check
      _
    $region19: #{tpu_custom_call.1} parent=1 // pred_check_branch
      %45 = sbr.rel (0) target = $region21
    $region20: #{tpu_custom_call.1} parent=1 // pred_region
      %s47 = ssub.s32 256, 256
      %48 = vsyncadd [#allocation4], %s47
      %s50 = sshll.u32 [#allocation7], 4
      %s51 = int_to_ptr.vmem [resolvable:$true] %s50
      %53 = dma.vmem_to_hbm [thread:$0]  %s51, 256, %s2, [#allocation4]
    $region21: #{tpu_custom_call.1} parent=1 // pred_fallthru
      _
    // Predicated region
    $region22: #{tpu_custom_call.1} parent=1 // pred_check
      _
    $region23: #{tpu_custom_call.1} parent=1 // pred_check_branch
      %55 = sbr.rel (0) target = $region25
    $region24: #{tpu_custom_call.1} parent=1 // pred_region
      %56 = dma.done [#allocation4], 256
    $region25: #{tpu_custom_call.1} parent=1 // pred_fallthru
      _
    %57 = vsyncpa [#allocation3], 1
    %58 = vsyncpa [#allocation6], 1
    %59 = vsyncpa [#allocation4], 1

</llo_original>
